<compile_context>
chip_gen: v6e
topology: v6e:2x2x1
jax: 0.10.0
libtpu: 0.0.40
codegen_flags: <defaults>
</compile_context>

<pallas_src>
import jax
import jax.numpy as jnp
from jax.experimental import pallas as pl
from jax.experimental.pallas import tpu as pltpu


def _round_up(x, m):
    return ((x + m - 1) // m) * m


def actor_kernel(x_ref, w1_ref, b1_ref, w3_ref, b3_ref, probs_ref):
    # x: [TB, S], w1: [S, H], b1: [1, H], w3: [H, A_pad], b3: [1, A_pad]
    x = x_ref[...]
    w1 = w1_ref[...]

    # layer_1 + ReLU.  K = S is tiny, so use an unrolled VPU outer-product
    # (broadcast-multiply-accumulate) rather than an MXU matmul padded to 128.
    h = jnp.broadcast_to(b1_ref[...], (x.shape[0], w1.shape[1]))
    for k in range(x.shape[1]):                     # S is static -> unrolls
        h = h + x[:, k:k + 1] * w1[k:k + 1, :]
    h = jnp.maximum(h, 0.0)

    # layer_3 (logits).  K = H = 128: MXU-native, f32 accumulation.
    logits = (
        jnp.dot(h, w3_ref[...], preferred_element_type=jnp.float32) + b3_ref[...]
    )

    # Numerically stable softmax along the lane dim.  Padded lanes carry a
    # -1e30 bias, so exp() == 0 there and they drop out of the normalization.
    m = jnp.max(logits, axis=-1, keepdims=True)
    e = jnp.exp(logits - m)
    denom = jnp.sum(e, axis=-1, keepdims=True)
    r = pl.reciprocal(denom, approx=True)           # EUP vrcp (free slot)
    r = r * (2.0 - denom * r)                       # one Newton step -> f32 acc
    probs_ref[...] = (e * r).astype(probs_ref.dtype)


def actor_forward(x, w1, b1, w3, b3, *, tb=1024):
    """x: [B, S]; w1: [S, H]; b1: [1, H]; w3: [H, A]; b3: [1, A] -> probs [B, A]."""
    B, S = x.shape
    H = w1.shape[1]
    A = w3.shape[1]

    # Lane-dense output width (multiple of 128).
    A_pad = _round_up(max(A, 128), 128)
    w3p = jnp.zeros((H, A_pad), w3.dtype).at[:, :A].set(w3)
    b3p = jnp.full((1, A_pad), -1e30, b3.dtype).at[:, :A].set(b3)

    # Batch tiling: big tiles for pipelining; pad B up to a multiple of TB.
    TB = tb if B >= tb else _round_up(B, 8)
    B_pad = _round_up(B, TB)
    if B_pad != B:
        x = jnp.zeros((B_pad, S), x.dtype).at[:B].set(x)
    grid = (B_pad // TB,)

    probs_pad = pl.pallas_call(
        actor_kernel,
        out_shape=jax.ShapeDtypeStruct((B_pad, A_pad), jnp.float32),
        grid=grid,
        in_specs=[
            pl.BlockSpec((TB, S), lambda i: (i, 0)),      # streamed per tile
            pl.BlockSpec((S, H), lambda i: (0, 0)),       # resident weights
            pl.BlockSpec((1, H), lambda i: (0, 0)),
            pl.BlockSpec((H, A_pad), lambda i: (0, 0)),
            pl.BlockSpec((1, A_pad), lambda i: (0, 0)),
        ],
        out_specs=pl.BlockSpec((TB, A_pad), lambda i: (i, 0)),
        compiler_params=pltpu.CompilerParams(
            dimension_semantics=("parallel",),            # megacore on v7x
        ),
    )(x, w1, b1, w3p, b3p)

    return probs_pad[:B, :A]


def init_params(key, state_space, action_space, hidden=128):
    """Deterministic synthetic init mimicking nn.Linear's uniform(-1/sqrt(fan_in), +)."""
    k1, k2, k3, k4 = jax.random.split(key, 4)
    bound1 = 1.0 / jnp.sqrt(jnp.float32(state_space))
    bound3 = 1.0 / jnp.sqrt(jnp.float32(hidden))
    # Stored transposed ([in, out]) relative to PyTorch's [out, in].
    w1 = jax.random.uniform(k1, (state_space, hidden), jnp.float32, -bound1, bound1)
    b1 = jax.random.uniform(k2, (1, hidden), jnp.float32, -bound1, bound1)
    w3 = jax.random.uniform(k3, (hidden, action_space), jnp.float32, -bound3, bound3)
    b3 = jax.random.uniform(k4, (1, action_space), jnp.float32, -bound3, bound3)
    return w1, b1, w3, b3


if __name__ == "__main__":
    key = jax.random.PRNGKey(0)
    state_space = 4     # pendulum-like observation
    action_space = 3    # small discretized action set
    batch = 64          # batch of env states (per-step tiny-B calls should be
                        # batched before hitting this kernel)

    kx, kp = jax.random.split(key)
    x = jax.random.normal(kx, (batch, state_space), jnp.float32)
    w1, b1, w3, b3 = init_params(kp, state_space, action_space)

    probs = actor_forward(x, w1, b1, w3, b3)
    probs = jax.block_until_ready(probs)

    # Reference check in plain JAX.
    h_ref = jnp.maximum(x @ w1 + b1, 0.0)
    logits_ref = h_ref @ w3 + b3
    probs_ref = jax.nn.softmax(logits_ref, axis=-1)
    assert probs.shape == (batch, action_space)
    assert jnp.allclose(probs, probs_ref, atol=1e-5, rtol=1e-5)
    assert jnp.allclose(jnp.sum(probs, axis=-1), 1.0, atol=1e-5)

    print("KERNEL_OK")
</pallas_src>

<mosaic_0001>
module attributes {stable_mosaic.version = 11 : i64} {
  func.func @actor_kernel(%arg0: i32, %arg1: memref<64x4xf32, #tpu.memory_space<vmem>>, %arg2: memref<4x128xf32, #tpu.memory_space<vmem>>, %arg3: memref<1x128xf32, #tpu.memory_space<vmem>>, %arg4: memref<128x128xf32, #tpu.memory_space<vmem>>, %arg5: memref<1x128xf32, #tpu.memory_space<vmem>>, %arg6: memref<64x128xf32, #tpu.memory_space<vmem>>) attributes {dimension_semantics = [#tpu.dimension_semantics<parallel>], iteration_bounds = array<i64: 1>, scalar_prefetch = 0 : i64, scratch_operands = 0 : i64, tpu.core_type = #tpu.core_type<tc>, window_params = [{transform_indices = @transform_0, window_bounds = array<i64: 64, 4>}, {pipeline_mode = #tpu.pipeline_mode<synchronous>, transform_indices = @transform_1, window_bounds = array<i64: 4, 128>}, {pipeline_mode = #tpu.pipeline_mode<synchronous>, transform_indices = @transform_2, window_bounds = array<i64: 1, 128>}, {pipeline_mode = #tpu.pipeline_mode<synchronous>, transform_indices = @transform_3, window_bounds = array<i64: 128, 128>}, {pipeline_mode = #tpu.pipeline_mode<synchronous>, transform_indices = @transform_4, window_bounds = array<i64: 1, 128>}, {transform_indices = @transform_5, window_bounds = array<i64: 64, 128>}]} {
    %c0 = arith.constant 0 : index
    %c0_0 = arith.constant 0 : index
    %0 = vector.load %arg1[%c0, %c0_0] : memref<64x4xf32, #tpu.memory_space<vmem>>, vector<64x4xf32>
    %c0_1 = arith.constant 0 : index
    %c0_2 = arith.constant 0 : index
    %1 = vector.load %arg2[%c0_1, %c0_2] : memref<4x128xf32, #tpu.memory_space<vmem>>, vector<4x128xf32>
    %c0_3 = arith.constant 0 : index
    %c0_4 = arith.constant 0 : index
    %2 = vector.load %arg3[%c0_3, %c0_4] : memref<1x128xf32, #tpu.memory_space<vmem>>, vector<1x128xf32>
    %3 = vector.shape_cast %2 : vector<1x128xf32> to vector<1x128xf32>
    %4 = vector.broadcast %3 : vector<1x128xf32> to vector<64x128xf32>
    %5 = vector.extract_strided_slice %0 {offsets = [0, 0], sizes = [64, 1], strides = [1, 1]} : vector<64x4xf32> to vector<64x1xf32>
    %6 = vector.extract_strided_slice %1 {offsets = [0, 0], sizes = [1, 128], strides = [1, 1]} : vector<4x128xf32> to vector<1x128xf32>
    %7 = vector.broadcast %5 : vector<64x1xf32> to vector<64x128xf32>
    %8 = vector.broadcast %6 : vector<1x128xf32> to vector<64x128xf32>
    %9 = arith.mulf %7, %8 : vector<64x128xf32>
    %10 = arith.addf %4, %9 : vector<64x128xf32>
    %11 = vector.extract_strided_slice %0 {offsets = [0, 1], sizes = [64, 1], strides = [1, 1]} : vector<64x4xf32> to vector<64x1xf32>
    %12 = vector.extract_strided_slice %1 {offsets = [1, 0], sizes = [1, 128], strides = [1, 1]} : vector<4x128xf32> to vector<1x128xf32>
    %13 = vector.broadcast %11 : vector<64x1xf32> to vector<64x128xf32>
    %14 = vector.broadcast %12 : vector<1x128xf32> to vector<64x128xf32>
    %15 = arith.mulf %13, %14 : vector<64x128xf32>
    %16 = arith.addf %10, %15 : vector<64x128xf32>
    %17 = vector.extract_strided_slice %0 {offsets = [0, 2], sizes = [64, 1], strides = [1, 1]} : vector<64x4xf32> to vector<64x1xf32>
    %18 = vector.extract_strided_slice %1 {offsets = [2, 0], sizes = [1, 128], strides = [1, 1]} : vector<4x128xf32> to vector<1x128xf32>
    %19 = vector.broadcast %17 : vector<64x1xf32> to vector<64x128xf32>
    %20 = vector.broadcast %18 : vector<1x128xf32> to vector<64x128xf32>
    %21 = arith.mulf %19, %20 : vector<64x128xf32>
    %22 = arith.addf %16, %21 : vector<64x128xf32>
    %23 = vector.extract_strided_slice %0 {offsets = [0, 3], sizes = [64, 1], strides = [1, 1]} : vector<64x4xf32> to vector<64x1xf32>
    %24 = vector.extract_strided_slice %1 {offsets = [3, 0], sizes = [1, 128], strides = [1, 1]} : vector<4x128xf32> to vector<1x128xf32>
    %25 = vector.broadcast %23 : vector<64x1xf32> to vector<64x128xf32>
    %26 = vector.broadcast %24 : vector<1x128xf32> to vector<64x128xf32>
    %27 = arith.mulf %25, %26 : vector<64x128xf32>
    %28 = arith.addf %22, %27 : vector<64x128xf32>
    %cst = arith.constant 0.000000e+00 : f32
    %29 = vector.broadcast %cst : f32 to vector<64x128xf32>
    %30 = arith.maximumf %28, %29 : vector<64x128xf32>
    %c0_5 = arith.constant 0 : index
    %c0_6 = arith.constant 0 : index
    %31 = vector.load %arg4[%c0_5, %c0_6] : memref<128x128xf32, #tpu.memory_space<vmem>>, vector<128x128xf32>
    %cst_7 = arith.constant dense<0.000000e+00> : vector<64x128xf32>
    %32 = tpu.matmul %30, %31, %cst_7 {dimension_numbers = #tpu.dot_dimension_numbers<[1], [0], [0], [1], [0, 0, 1, 1], [], []>} : vector<64x128xf32>, vector<128x128xf32>, vector<64x128xf32> -> vector<64x128xf32>
    %c0_8 = arith.constant 0 : index
    %c0_9 = arith.constant 0 : index
    %33 = vector.load %arg5[%c0_8, %c0_9] : memref<1x128xf32, #tpu.memory_space<vmem>>, vector<1x128xf32>
    %34 = vector.broadcast %33 : vector<1x128xf32> to vector<64x128xf32>
    %35 = arith.addf %32, %34 : vector<64x128xf32>
    %cst_10 = arith.constant dense<0xFF800000> : vector<64xf32>
    %36 = vector.multi_reduction <maximumf>, %35, %cst_10 [1] : vector<64x128xf32> to vector<64xf32>
    %37 = vector.shape_cast %36 : vector<64xf32> to vector<64x1xf32>
    %38 = vector.broadcast %37 : vector<64x1xf32> to vector<64x128xf32>
    %39 = arith.subf %35, %38 : vector<64x128xf32>
    %40 = math.exp %39 : vector<64x128xf32>
    %cst_11 = arith.constant dense<0.000000e+00> : vector<64xf32>
    %41 = vector.multi_reduction <add>, %40, %cst_11 [1] : vector<64x128xf32> to vector<64xf32>
    %42 = vector.shape_cast %41 : vector<64xf32> to vector<64x1xf32>
    %43 = tpu.reciprocal %42 {approx = true} : vector<64x1xf32> -> vector<64x1xf32>
    %44 = arith.mulf %42, %43 : vector<64x1xf32>
    %cst_12 = arith.constant 2.000000e+00 : f32
    %45 = vector.broadcast %cst_12 : f32 to vector<64x1xf32>
    %46 = arith.subf %45, %44 : vector<64x1xf32>
    %47 = arith.mulf %43, %46 : vector<64x1xf32>
    %48 = vector.broadcast %47 : vector<64x1xf32> to vector<64x128xf32>
    %49 = arith.mulf %40, %48 : vector<64x128xf32>
    %c0_13 = arith.constant 0 : index
    %c0_14 = arith.constant 0 : index
    %50 = vector.load %arg6[%c0_13, %c0_14] : memref<64x128xf32, #tpu.memory_space<vmem>>, vector<64x128xf32>
    tpu.vector_store %arg6[%c0_13, %c0_14], %49 {strides = array<i32>} : memref<64x128xf32, #tpu.memory_space<vmem>>, vector<64x128xf32>,
    return
  }
  func.func @transform_0(%arg0: i32) -> (i32, i32) {
    %c0_i32 = arith.constant 0 : i32
    %c0_i32_0 = arith.constant 0 : i32
    return %arg0, %c0_i32 : i32, i32
  }
  func.func @transform_1(%arg0: i32) -> (i32, i32) {
    %c0_i32 = arith.constant 0 : i32
    %c0_i32_0 = arith.constant 0 : i32
    %c0_i32_1 = arith.constant 0 : i32
    return %c0_i32, %c0_i32_0 : i32, i32
  }
  func.func @transform_2(%arg0: i32) -> (i32, i32) {
    %c0_i32 = arith.constant 0 : i32
    %c0_i32_0 = arith.constant 0 : i32
    %c0_i32_1 = arith.constant 0 : i32
    return %c0_i32, %c0_i32_0 : i32, i32
  }
  func.func @transform_3(%arg0: i32) -> (i32, i32) {
    %c0_i32 = arith.constant 0 : i32
    %c0_i32_0 = arith.constant 0 : i32
    %c0_i32_1 = arith.constant 0 : i32
    return %c0_i32, %c0_i32_0 : i32, i32
  }
  func.func @transform_4(%arg0: i32) -> (i32, i32) {
    %c0_i32 = arith.constant 0 : i32
    %c0_i32_0 = arith.constant 0 : i32
    %c0_i32_1 = arith.constant 0 : i32
    return %c0_i32, %c0_i32_0 : i32, i32
  }
  func.func @transform_5(%arg0: i32) -> (i32, i32) {
    %c0_i32 = arith.constant 0 : i32
    %c0_i32_0 = arith.constant 0 : i32
    return %arg0, %c0_i32 : i32, i32
  }
}

</mosaic_0001>

<llo_original>
// kernel: tpu_custom_call.1
$region0: #{tpu_custom_call.1}
  #allocation0 [shape = 'u32[]', space=smem, size = 0x4, offset = 0x4, fixed_abs, tag = 'smem constant byte address 0x4 - core index']
  #allocation1 [shape = 'u32[144,128]{1,0:T(1,128)}', space=vmem, size = 0x12000, scoped, tag = 'internal scratch']
  %s0 = inlined_call_operand.vmem [shape: f32[64,4], index: 0, kind: input, shape index: {}]
  %s1 = inlined_call_operand.vmem [shape: f32[4,128], index: 1, kind: input, shape index: {}]
  %s2 = inlined_call_operand.vmem [shape: f32[1,128], index: 2, kind: input, shape index: {}]
  %s3 = inlined_call_operand.hbm [shape: f32[128,128], index: 3, kind: input, shape index: {}]
  %s4 = inlined_call_operand.vmem [shape: f32[1,128], index: 4, kind: input, shape index: {}]
  %s5 = inlined_call_operand.hbm [shape: f32[64,128], index: 5, kind: output, shape index: {}]
  %s6 = sld [smem:[#allocation0]]
  $region34: #{tpu_custom_call.1} parent=0
    _
  %s8 = ssub.s32 1, %s6
  %s9 = scalar_select 0, %s8, %s6
  $region1: #{tpu_custom_call.1} parent=0
    #allocation2 [shape = 'u8[65536]{0}', space=vmem, size = 0x10000, scoped, tag = 'input window, operand 3, single buffered']
    #allocation3 [shape = 's32[1]{0}', space=sflag, size = 0x4, scoped, tag = 'scoped memory for tpu_custom_call.1']
    #allocation4 [shape = 's32[1]{0}', space=sflag, size = 0x4, scoped, tag = 'scoped memory for tpu_custom_call.1']
    #allocation5 [shape = 'u8[32768]{0}', space=vmem, size = 0x8000, scoped, tag = 'output window, operand 0, single buffered']
    %10 = vsyncpa [#allocation3], 0
    %11 = vsyncpa [#allocation4], 0
    // Predicated region
    $region2: #{tpu_custom_call.1} parent=1 // pred_check
      _
    $region3: #{tpu_custom_call.1} parent=1 // pred_check_branch
      %13 = sbr.rel (0) target = $region5
    $region4: #{tpu_custom_call.1} parent=1 // pred_region
      _
    $region5: #{tpu_custom_call.1} parent=1 // pred_fallthru
      _
    // Predicated region
    $region6: #{tpu_custom_call.1} parent=1 // pred_check
      _
    $region7: #{tpu_custom_call.1} parent=1 // pred_check_branch
      %15 = sbr.rel (0) target = $region9
    $region8: #{tpu_custom_call.1} parent=1 // pred_region
      _
    $region9: #{tpu_custom_call.1} parent=1 // pred_fallthru
      _
    // Predicated region
    $region10: #{tpu_custom_call.1} parent=1 // pred_check
      _
    $region11: #{tpu_custom_call.1} parent=1 // pred_check_branch
      %17 = sbr.rel (0) target = $region13
    $region12: #{tpu_custom_call.1} parent=1 // pred_region
      _
    $region13: #{tpu_custom_call.1} parent=1 // pred_fallthru
      _
    // Predicated region
    $region14: #{tpu_custom_call.1} parent=1 // pred_check
      _
    $region15: #{tpu_custom_call.1} parent=1 // pred_check_branch
      %19 = sbr.rel (0) target = $region17
    $region16: #{tpu_custom_call.1} parent=1 // pred_region
      %s21 = ssub.s32 2048, 2048
      %22 = vsyncadd [#allocation3], %s21
      %s23 = sshll.u32 [#allocation2], 4
      %s24 = int_to_ptr.vmem [resolvable:$true] %s23
      %29 = dma.hbm_to_vmem [thread:$0]  %s3, 2048, %s24, [#allocation3], 128, 128, 8
    $region17: #{tpu_custom_call.1} parent=1 // pred_fallthru
      _
    // Predicated region
    $region18: #{tpu_custom_call.1} parent=1 // pred_check
      _
    $region19: #{tpu_custom_call.1} parent=1 // pred_check_branch
      %31 = sbr.rel (0) target = $region21
    $region20: #{tpu_custom_call.1} parent=1 // pred_region
      _
    $region21: #{tpu_custom_call.1} parent=1 // pred_fallthru
      _
    // Predicated region
    $region22: #{tpu_custom_call.1} parent=1 // pred_check
      _
    $region23: #{tpu_custom_call.1} parent=1 // pred_check_branch
      %33 = sbr.rel (0) target = $region25
    $region24: #{tpu_custom_call.1} parent=1 // pred_region
      %34 = dma.done [#allocation3], 2048
    $region25: #{tpu_custom_call.1} parent=1 // pred_fallthru
      _
    %v35 = vld [vmem:[%s0] sm:$0xff]
    %v36 = vld [vmem:[%s0 + $0x8] sm:$0xff]
    %v37 = vld [vmem:[%s0 + $0x10] sm:$0xff]
    %v38 = vld [vmem:[%s0 + $0x18] sm:$0xff]
    %v39 = vld [vmem:[%s0 + $0x20] sm:$0xff]
    %v40 = vld [vmem:[%s0 + $0x28] sm:$0xff]
    %v41 = vld [vmem:[%s0 + $0x30] sm:$0xff]
    %v42 = vld [vmem:[%s0 + $0x38] sm:$0xff]
    %v43 = vld [vmem:[%s1] sm:$0xf]
    %v44 = vld [vmem:[%s2] sm:$0x1]
    %v46 = vlaneseq
    %v47 = vshrl.u32 %v46, 7
    %v48 = vsub.s32 0, %v47
    %v49 = vrot.slane %v44, %v48
    %52 = vset.pattern.permute.xlu0 0
    %53 = vperm.xlu0 %52, %v35
    %v54 = vpop.permute.xlu0 %53
    %57 = vset.pattern.permute.xlu0 0
    %58 = vperm.xlu0 %57, %v36
    %v59 = vpop.permute.xlu0 %58
    %62 = vset.pattern.permute.xlu0 0
    %63 = vperm.xlu0 %62, %v37
    %v64 = vpop.permute.xlu0 %63
    %67 = vset.pattern.permute.xlu0 0
    %68 = vperm.xlu0 %67, %v38
    %v69 = vpop.permute.xlu0 %68
    %72 = vset.pattern.permute.xlu0 0
    %73 = vperm.xlu0 %72, %v39
    %v74 = vpop.permute.xlu0 %73
    %77 = vset.pattern.permute.xlu0 0
    %78 = vperm.xlu0 %77, %v40
    %v79 = vpop.permute.xlu0 %78
    %82 = vset.pattern.permute.xlu0 0
    %83 = vperm.xlu0 %82, %v41
    %v84 = vpop.permute.xlu0 %83
    %87 = vset.pattern.permute.xlu0 0
    %88 = vperm.xlu0 %87, %v42
    %v89 = vpop.permute.xlu0 %88
    %v91 = vlaneseq
    %v92 = vshrl.u32 %v91, 7
    %v93 = vsub.s32 0, %v92
    %v94 = vrot.slane %v43, %v93
    %v95 = vmul.f32 %v54, %v94
    %v96 = vmul.f32 %v59, %v94
    %v97 = vmul.f32 %v64, %v94
    %v98 = vmul.f32 %v69, %v94
    %v99 = vmul.f32 %v74, %v94
    %v100 = vmul.f32 %v79, %v94
    %v101 = vmul.f32 %v84, %v94
    %v102 = vmul.f32 %v89, %v94
    %v103 = vadd.f32 %v49, %v95
    %v104 = vadd.f32 %v49, %v96
    %v105 = vadd.f32 %v49, %v97
    %v106 = vadd.f32 %v49, %v98
    %v107 = vadd.f32 %v49, %v99
    %v108 = vadd.f32 %v49, %v100
    %v109 = vadd.f32 %v49, %v101
    %v110 = vadd.f32 %v49, %v102
    %111 = vset.pattern.permute.xlu0 1
    %112 = vperm.xlu0 %111, %v35
    %v113 = vpop.permute.xlu0 %112
    %115 = vset.pattern.permute.xlu0 1
    %116 = vperm.xlu0 %115, %v36
    %v117 = vpop.permute.xlu0 %116
    %119 = vset.pattern.permute.xlu0 1
    %120 = vperm.xlu0 %119, %v37
    %v121 = vpop.permute.xlu0 %120
    %123 = vset.pattern.permute.xlu0 1
    %124 = vperm.xlu0 %123, %v38
    %v125 = vpop.permute.xlu0 %124
    %127 = vset.pattern.permute.xlu0 1
    %128 = vperm.xlu0 %127, %v39
    %v129 = vpop.permute.xlu0 %128
    %131 = vset.pattern.permute.xlu0 1
    %132 = vperm.xlu0 %131, %v40
    %v133 = vpop.permute.xlu0 %132
    %135 = vset.pattern.permute.xlu0 1
    %136 = vperm.xlu0 %135, %v41
    %v137 = vpop.permute.xlu0 %136
    %139 = vset.pattern.permute.xlu0 1
    %140 = vperm.xlu0 %139, %v42
    %v141 = vpop.permute.xlu0 %140
    %v143 = vlaneseq
    %v144 = vshrl.u32 %v143, 7
    %v145 = vsub.s32 1, %v144
    %v146 = vrot.slane %v43, %v145
    %v147 = vmul.f32 %v113, %v146
    %v148 = vmul.f32 %v117, %v146
    %v149 = vmul.f32 %v121, %v146
    %v150 = vmul.f32 %v125, %v146
    %v151 = vmul.f32 %v129, %v146
    %v152 = vmul.f32 %v133, %v146
    %v153 = vmul.f32 %v137, %v146
    %v154 = vmul.f32 %v141, %v146
    %v155 = vadd.f32 %v103, %v147
    %v156 = vadd.f32 %v104, %v148
    %v157 = vadd.f32 %v105, %v149
    %v158 = vadd.f32 %v106, %v150
    %v159 = vadd.f32 %v107, %v151
    %v160 = vadd.f32 %v108, %v152
    %v161 = vadd.f32 %v109, %v153
    %v162 = vadd.f32 %v110, %v154
    %163 = vset.pattern.permute.xlu0 2
    %164 = vperm.xlu0 %163, %v35
    %v165 = vpop.permute.xlu0 %164
    %167 = vset.pattern.permute.xlu0 2
    %168 = vperm.xlu0 %167, %v36
    %v169 = vpop.permute.xlu0 %168
    %171 = vset.pattern.permute.xlu0 2
    %172 = vperm.xlu0 %171, %v37
    %v173 = vpop.permute.xlu0 %172
    %175 = vset.pattern.permute.xlu0 2
    %176 = vperm.xlu0 %175, %v38
    %v177 = vpop.permute.xlu0 %176
    %179 = vset.pattern.permute.xlu0 2
    %180 = vperm.xlu0 %179, %v39
    %v181 = vpop.permute.xlu0 %180
    %183 = vset.pattern.permute.xlu0 2
    %184 = vperm.xlu0 %183, %v40
    %v185 = vpop.permute.xlu0 %184
    %187 = vset.pattern.permute.xlu0 2
    %188 = vperm.xlu0 %187, %v41
    %v189 = vpop.permute.xlu0 %188
    %191 = vset.pattern.permute.xlu0 2
    %192 = vperm.xlu0 %191, %v42
    %v193 = vpop.permute.xlu0 %192
    %v195 = vlaneseq
    %v196 = vshrl.u32 %v195, 7
    %v197 = vsub.s32 2, %v196
    %v198 = vrot.slane %v43, %v197
    %v199 = vmul.f32 %v165, %v198
    %v200 = vmul.f32 %v169, %v198
    %v201 = vmul.f32 %v173, %v198
    %v202 = vmul.f32 %v177, %v198
    %v203 = vmul.f32 %v181, %v198
    %v204 = vmul.f32 %v185, %v198
    %v205 = vmul.f32 %v189, %v198
    %v206 = vmul.f32 %v193, %v198
    %v207 = vadd.f32 %v155, %v199
    %v208 = vadd.f32 %v156, %v200
    %v209 = vadd.f32 %v157, %v201
    %v210 = vadd.f32 %v158, %v202
    %v211 = vadd.f32 %v159, %v203
    %v212 = vadd.f32 %v160, %v204
    %v213 = vadd.f32 %v161, %v205
    %v214 = vadd.f32 %v162, %v206
    %215 = vset.pattern.permute.xlu0 3
    %216 = vperm.xlu0 %215, %v35
    %v217 = vpop.permute.xlu0 %216
    %219 = vset.pattern.permute.xlu0 3
    %220 = vperm.xlu0 %219, %v36
    %v221 = vpop.permute.xlu0 %220
    %223 = vset.pattern.permute.xlu0 3
    %224 = vperm.xlu0 %223, %v37
    %v225 = vpop.permute.xlu0 %224
    %227 = vset.pattern.permute.xlu0 3
    %228 = vperm.xlu0 %227, %v38
    %v229 = vpop.permute.xlu0 %228
    %231 = vset.pattern.permute.xlu0 3
    %232 = vperm.xlu0 %231, %v39
    %v233 = vpop.permute.xlu0 %232
    %235 = vset.pattern.permute.xlu0 3
    %236 = vperm.xlu0 %235, %v40
    %v237 = vpop.permute.xlu0 %236
    %239 = vset.pattern.permute.xlu0 3
    %240 = vperm.xlu0 %239, %v41
    %v241 = vpop.permute.xlu0 %240
    %243 = vset.pattern.permute.xlu0 3
    %244 = vperm.xlu0 %243, %v42
    %v245 = vpop.permute.xlu0 %244
    %v247 = vlaneseq
    %v248 = vshrl.u32 %v247, 7
    %v249 = vsub.s32 3, %v248
    %v250 = vrot.slane %v43, %v249
    %v251 = vmul.f32 %v217, %v250
    %v252 = vmul.f32 %v221, %v250
    %v253 = vmul.f32 %v225, %v250
    %v254 = vmul.f32 %v229, %v250
    %v255 = vmul.f32 %v233, %v250
    %v256 = vmul.f32 %v237, %v250
    %v257 = vmul.f32 %v241, %v250
    %v258 = vmul.f32 %v245, %v250
    %v259 = vadd.f32 %v207, %v251
    %v260 = vadd.f32 %v208, %v252
    %v261 = vadd.f32 %v209, %v253
    %v262 = vadd.f32 %v210, %v254
    %v263 = vadd.f32 %v211, %v255
    %v264 = vadd.f32 %v212, %v256
    %v265 = vadd.f32 %v213, %v257
    %v266 = vadd.f32 %v214, %v258
    %v267 = vmax.f32 %v259, 0.0
    %v268 = vmax.f32 %v260, 0.0
    %v269 = vmax.f32 %v261, 0.0
    %v270 = vmax.f32 %v262, 0.0
    %v271 = vmax.f32 %v263, 0.0
    %v272 = vmax.f32 %v264, 0.0
    %v273 = vmax.f32 %v265, 0.0
    %v274 = vmax.f32 %v266, 0.0
    %v275 = vld [vmem:[#allocation2] sm:$0xff]
    %v276 = vld [vmem:[#allocation2 + $0x8] sm:$0xff]
    %v277 = vld [vmem:[#allocation2 + $0x10] sm:$0xff]
    %v278 = vld [vmem:[#allocation2 + $0x18] sm:$0xff]
    %v279 = vld [vmem:[#allocation2 + $0x20] sm:$0xff]
    %v280 = vld [vmem:[#allocation2 + $0x28] sm:$0xff]
    %v281 = vld [vmem:[#allocation2 + $0x30] sm:$0xff]
    %v282 = vld [vmem:[#allocation2 + $0x38] sm:$0xff]
    %v283 = vld [vmem:[#allocation2 + $0x40] sm:$0xff]
    %v284 = vld [vmem:[#allocation2 + $0x48] sm:$0xff]
    %v285 = vld [vmem:[#allocation2 + $0x50] sm:$0xff]
    %v286 = vld [vmem:[#allocation2 + $0x58] sm:$0xff]
    %v287 = vld [vmem:[#allocation2 + $0x60] sm:$0xff]
    %v288 = vld [vmem:[#allocation2 + $0x68] sm:$0xff]
    %v289 = vld [vmem:[#allocation2 + $0x70] sm:$0xff]
    %v290 = vld [vmem:[#allocation2 + $0x78] sm:$0xff]
    %v291 = vld [vmem:[%s4] sm:$0x1]
    %v293 = vlaneseq
    %v294 = vshrl.u32 %v293, 7
    %v295 = vsub.s32 0, %v294
    %v296 = vrot.slane %v291, %v295
    %298 = vmatprep.subr.mxu0 0.0
    %299 = vmatpush1.msra.mxu0 %v290
    %300 = vmatprep.subr.mxu0 0.0
    %301 = vmatpush1.msra.mxu0 %v289
    %302 = vmatprep.subr.mxu0 0.0
    %303 = vmatpush1.msra.mxu0 %v288
    %304 = vmatprep.subr.mxu0 0.0
    %305 = vmatpush1.msra.mxu0 %v287
    %306 = vmatprep.subr.mxu0 0.0
    %307 = vmatpush1.msra.mxu0 %v286
    %308 = vmatprep.subr.mxu0 0.0
    %309 = vmatpush1.msra.mxu0 %v285
    %310 = vmatprep.subr.mxu0 0.0
    %311 = vmatpush1.msra.mxu0 %v284
    %312 = vmatprep.subr.mxu0 0.0
    %313 = vmatpush1.msra.mxu0 %v283
    %314 = vmatprep.subr.mxu0 0.0
    %315 = vmatpush1.msra.mxu0 %v282
    %316 = vmatprep.subr.mxu0 0.0
    %317 = vmatpush1.msra.mxu0 %v281
    %318 = vmatprep.subr.mxu0 0.0
    %319 = vmatpush1.msra.mxu0 %v280
    %320 = vmatprep.subr.mxu0 0.0
    %321 = vmatpush1.msra.mxu0 %v279
    %322 = vmatprep.subr.mxu0 0.0
    %323 = vmatpush1.msra.mxu0 %v278
    %324 = vmatprep.subr.mxu0 0.0
    %325 = vmatpush1.msra.mxu0 %v277
    %326 = vmatprep.subr.mxu0 0.0
    %327 = vmatpush1.msra.mxu0 %v276
    %328 = vmatprep.subr.mxu0 0.0
    %329 = vmatpush1.msra.mxu0 %v275
    %330 = vmatprep.subr.mxu0 0.0
    %331 = vmatpush2.msra.mxu0 0.0
    %332 = vmatprep.subr.mxu0 0.0
    %333 = vmatpush2.msra.mxu0 0.0
    %334 = vmatprep.subr.mxu0 0.0
    %335 = vmatpush2.msra.mxu0 0.0
    %336 = vmatprep.subr.mxu0 0.0
    %337 = vmatpush2.msra.mxu0 0.0
    %338 = vmatprep.subr.mxu0 0.0
    %339 = vmatpush2.msra.mxu0 0.0
    %340 = vmatprep.subr.mxu0 0.0
    %341 = vmatpush2.msra.mxu0 0.0
    %342 = vmatprep.subr.mxu0 0.0
    %343 = vmatpush2.msra.mxu0 0.0
    %344 = vmatprep.subr.mxu0 0.0
    %345 = vmatpush2.msra.mxu0 0.0
    %346 = vmatprep.subr.mxu0 0.0
    %347 = vmatpush2.msra.mxu0 0.0
    %348 = vmatprep.subr.mxu0 0.0
    %349 = vmatpush2.msra.mxu0 0.0
    %350 = vmatprep.subr.mxu0 0.0
    %351 = vmatpush2.msra.mxu0 0.0
    %352 = vmatprep.subr.mxu0 0.0
    %353 = vmatpush2.msra.mxu0 0.0
    %354 = vmatprep.subr.mxu0 0.0
    %355 = vmatpush2.msra.mxu0 0.0
    %356 = vmatprep.subr.mxu0 0.0
    %357 = vmatpush2.msra.mxu0 0.0
    %358 = vmatprep.subr.mxu0 0.0
    %359 = vmatpush2.msra.mxu0 0.0
    %360 = vmatprep.subr.mxu0 0.0
    %361 = vmatpush2.msra.mxu0 0.0
    %362 = vmatprep.mubr.f32.mxu0 0.0
    %363 = vmatmul.mubr.f32.gmra.mxu0 %v267
    %v364 = vpop.f32.mrf.mxu0
    %v365 = vadd.f32 %v296, %v364
    %v366 = vpop.f32.mrf.mxu0
    %367 = vmatprep.mubr.f32.mxu0 0.0
    %368 = vmatmul.mubr.f32.gmra.mxu0 %v268
    %v369 = vpop.f32.mrf.mxu0
    %v370 = vadd.f32 %v296, %v369
    %v371 = vpop.f32.mrf.mxu0
    %372 = vmatprep.mubr.f32.mxu0 0.0
    %373 = vmatmul.mubr.f32.gmra.mxu0 %v269
    %v374 = vpop.f32.mrf.mxu0
    %v375 = vadd.f32 %v296, %v374
    %v376 = vpop.f32.mrf.mxu0
    %377 = vmatprep.mubr.f32.mxu0 0.0
    %378 = vmatmul.mubr.f32.gmra.mxu0 %v270
    %v379 = vpop.f32.mrf.mxu0
    %v380 = vadd.f32 %v296, %v379
    %v381 = vpop.f32.mrf.mxu0
    %382 = vmatprep.mubr.f32.mxu0 0.0
    %383 = vmatmul.mubr.f32.gmra.mxu0 %v271
    %v384 = vpop.f32.mrf.mxu0
    %v385 = vadd.f32 %v296, %v384
    %v386 = vpop.f32.mrf.mxu0
    %387 = vmatprep.mubr.f32.mxu0 0.0
    %388 = vmatmul.mubr.f32.gmra.mxu0 %v272
    %v389 = vpop.f32.mrf.mxu0
    %v390 = vadd.f32 %v296, %v389
    %v391 = vpop.f32.mrf.mxu0
    %392 = vmatprep.mubr.f32.mxu0 0.0
    %393 = vmatmul.mubr.f32.gmra.mxu0 %v273
    %v394 = vpop.f32.mrf.mxu0
    %v395 = vadd.f32 %v296, %v394
    %v396 = vpop.f32.mrf.mxu0
    %397 = vmatprep.mubr.f32.mxu0 0.0
    %398 = vmatmul.mubr.f32.gmra.mxu0 %v274
    %v399 = vpop.f32.mrf.mxu0
    %v400 = vadd.f32 %v296, %v399
    %v401 = vpop.f32.mrf.mxu0
    %402 = vdwg.mxu0
    %403 = vmax.xlane.f32.xlu0 %v365
    %v404 = vpop.xlane.xlu0 %403
    %405 = vmax.xlane.f32.xlu0 %v370
    %v406 = vpop.xlane.xlu0 %405
    %407 = vmax.xlane.f32.xlu0 %v375
    %v408 = vpop.xlane.xlu0 %407
    %409 = vmax.xlane.f32.xlu0 %v380
    %v410 = vpop.xlane.xlu0 %409
    %411 = vmax.xlane.f32.xlu0 %v385
    %v412 = vpop.xlane.xlu0 %411
    %413 = vmax.xlane.f32.xlu0 %v390
    %v414 = vpop.xlane.xlu0 %413
    %415 = vmax.xlane.f32.xlu0 %v395
    %v416 = vpop.xlane.xlu0 %415
    %417 = vmax.xlane.f32.xlu0 %v400
    %v418 = vpop.xlane.xlu0 %417
    %v419 = vsub.f32 %v365, %v404
    %v420 = vsub.f32 %v370, %v406
    %v421 = vsub.f32 %v375, %v408
    %v422 = vsub.f32 %v380, %v410
    %v423 = vsub.f32 %v385, %v412
    %v424 = vsub.f32 %v390, %v414
    %v425 = vsub.f32 %v395, %v416
    %v426 = vsub.f32 %v400, %v418
    %v427 = vmul.f32 %v419, 1.442695
    %v428 = vpow.pop %v427
    %v429 = vmul.f32 %v420, 1.442695
    %v430 = vpow.pop %v429
    %v431 = vmul.f32 %v421, 1.442695
    %v432 = vpow.pop %v431
    %v433 = vmul.f32 %v422, 1.442695
    %v434 = vpow.pop %v433
    %v435 = vmul.f32 %v423, 1.442695
    %v436 = vpow.pop %v435
    %v437 = vmul.f32 %v424, 1.442695
    %v438 = vpow.pop %v437
    %v439 = vmul.f32 %v425, 1.442695
    %v440 = vpow.pop %v439
    %v441 = vmul.f32 %v426, 1.442695
    %v442 = vpow.pop %v441
    %443 = vadd.xlane.f32.xlu0 %v428
    %v444 = vpop.xlane.xlu0 %443
    %445 = vadd.xlane.f32.xlu0 %v430
    %v446 = vpop.xlane.xlu0 %445
    %447 = vadd.xlane.f32.xlu0 %v432
    %v448 = vpop.xlane.xlu0 %447
    %449 = vadd.xlane.f32.xlu0 %v434
    %v450 = vpop.xlane.xlu0 %449
    %451 = vadd.xlane.f32.xlu0 %v436
    %v452 = vpop.xlane.xlu0 %451
    %453 = vadd.xlane.f32.xlu0 %v438
    %v454 = vpop.xlane.xlu0 %453
    %455 = vadd.xlane.f32.xlu0 %v440
    %v456 = vpop.xlane.xlu0 %455
    %457 = vadd.xlane.f32.xlu0 %v442
    %v458 = vpop.xlane.xlu0 %457
    %v459 = vrcp.pop %v444
    %v460 = vrcp.pop %v446
    %v461 = vrcp.pop %v448
    %v462 = vrcp.pop %v450
    %v463 = vrcp.pop %v452
    %v464 = vrcp.pop %v454
    %v465 = vrcp.pop %v456
    %v466 = vrcp.pop %v458
    %v467 = vmul.f32 %v444, %v459
    %v468 = vmul.f32 %v446, %v460
    %v469 = vmul.f32 %v448, %v461
    %v470 = vmul.f32 %v450, %v462
    %v471 = vmul.f32 %v452, %v463
    %v472 = vmul.f32 %v454, %v464
    %v473 = vmul.f32 %v456, %v465
    %v474 = vmul.f32 %v458, %v466
    %v475 = vsub.f32 2.0, %v467
    %v476 = vsub.f32 2.0, %v468
    %v477 = vsub.f32 2.0, %v469
    %v478 = vsub.f32 2.0, %v470
    %v479 = vsub.f32 2.0, %v471
    %v480 = vsub.f32 2.0, %v472
    %v481 = vsub.f32 2.0, %v473
    %v482 = vsub.f32 2.0, %v474
    %v483 = vmul.f32 %v459, %v475
    %v484 = vmul.f32 %v460, %v476
    %v485 = vmul.f32 %v461, %v477
    %v486 = vmul.f32 %v462, %v478
    %v487 = vmul.f32 %v463, %v479
    %v488 = vmul.f32 %v464, %v480
    %v489 = vmul.f32 %v465, %v481
    %v490 = vmul.f32 %v466, %v482
    %v491 = vmul.f32 %v428, %v483
    %v492 = vmul.f32 %v430, %v484
    %v493 = vmul.f32 %v432, %v485
    %v494 = vmul.f32 %v434, %v486
    %v495 = vmul.f32 %v436, %v487
    %v496 = vmul.f32 %v438, %v488
    %v497 = vmul.f32 %v440, %v489
    %v498 = vmul.f32 %v442, %v490
    %499 = vst [vmem:[#allocation5] sm:$0xff] %v491
    %500 = vst [vmem:[#allocation5 + $0x8] sm:$0xff] %v492
    %501 = vst [vmem:[#allocation5 + $0x10] sm:$0xff] %v493
    %502 = vst [vmem:[#allocation5 + $0x18] sm:$0xff] %v494
    %503 = vst [vmem:[#allocation5 + $0x20] sm:$0xff] %v495
    %504 = vst [vmem:[#allocation5 + $0x28] sm:$0xff] %v496
    %505 = vst [vmem:[#allocation5 + $0x30] sm:$0xff] %v497
    %506 = vst [vmem:[#allocation5 + $0x38] sm:$0xff] %v498
    // Predicated region
    $region26: #{tpu_custom_call.1} parent=1 // pred_check
      _
    $region27: #{tpu_custom_call.1} parent=1 // pred_check_branch
      %508 = sbr.rel (0) target = $region29
    $region28: #{tpu_custom_call.1} parent=1 // pred_region
      %s510 = ssub.s32 1024, 1024
      %511 = vsyncadd [#allocation4], %s510
      %s512 = sshll.u32 [#allocation5], 4
      %s513 = int_to_ptr.vmem [resolvable:$true] %s512
      %518 = dma.vmem_to_hbm [thread:$0]  %s513, 1024, %s5, [#allocation4], 128, 128, 8
    $region29: #{tpu_custom_call.1} parent=1 // pred_fallthru
      _
    // Predicated region
    $region30: #{tpu_custom_call.1} parent=1 // pred_check
      _
    $region31: #{tpu_custom_call.1} parent=1 // pred_check_branch
      %520 = sbr.rel (0) target = $region33
    $region32: #{tpu_custom_call.1} parent=1 // pred_region
      %521 = dma.done [#allocation4], 1024
    $region33: #{tpu_custom_call.1} parent=1 // pred_fallthru
      _
    %522 = vsyncpa [#allocation3], 1
    %523 = vsyncpa [#allocation4], 1

</llo_original>
